<compile_context>
chip_gen: v7x
topology: tpu7x:2x2x1
jax: 0.10.0
libtpu: 0.0.40
codegen_flags: <defaults>
</compile_context>

<pallas_src>
import functools

import jax
import jax.numpy as jnp
from jax import lax
from jax.experimental import pallas as pl
from jax.experimental.pallas import tpu as pltpu

EMBED_DIM = 300
PAD_IDX = 0

_SUBLANES = 8
_MAX_TILE_N = 1024          # token rows gathered per grid step
_ONEHOT_MAX_VOCAB = 1024    # table <= 1024 x 300 f32 (~1.2 MB) -> keep in VMEM, MXU gather
_ISSUE_UNROLL = 8           # unroll factor for the DMA descriptor-issue loop


def _round_up(x, m):
    return (x + m - 1) // m * m


# ---------------------------------------------------------------------------
# Fast path (small vocab): table resident in VMEM, gather via one-hot matmul.
# ---------------------------------------------------------------------------
def _onehot_gather_kernel(ids_ref, table_ref, out_ref):
    """ids_ref: (tile_n, 1) i32 VMEM; table_ref: (V, D) VMEM; out_ref: (tile_n, D) VMEM."""
    tile_n = out_ref.shape[0]
    v = table_ref.shape[0]
    iota = lax.broadcasted_iota(jnp.int32, (tile_n, v), 1)
    onehot = (ids_ref[...] == iota).astype(table_ref.dtype)
    out_ref[...] = jnp.dot(
        onehot,
        table_ref[...],
        preferred_element_type=jnp.float32,
        precision=lax.Precision.HIGHEST,
    ).astype(out_ref.dtype)


def _embed_onehot(ids, table, tile_n, n_pad):
    v, d = table.shape
    return pl.pallas_call(
        _onehot_gather_kernel,
        out_shape=jax.ShapeDtypeStruct((n_pad, d), table.dtype),
        grid=(n_pad // tile_n,),
        in_specs=[
            pl.BlockSpec((tile_n, 1), lambda t: (t, 0)),   # ids tile
            pl.BlockSpec((v, d), lambda t: (0, 0)),        # full table, VMEM-resident
        ],
        out_specs=pl.BlockSpec((tile_n, d), lambda t: (t, 0)),
        compiler_params=pltpu.CompilerParams(dimension_semantics=("parallel",)),
    )(ids.reshape(n_pad, 1), table)


# ---------------------------------------------------------------------------
# General path (large vocab): table in HBM, per-row DMA gather into output tile.
# ---------------------------------------------------------------------------
def _dma_gather_kernel(ids_ref, table_hbm, out_ref, sem, *, tile_n):
    """Gather `tile_n` embedding rows from the HBM table into the output tile.

    ids_ref   : (n_pad,)      i32 SMEM   (scalar-prefetched token ids)
    table_hbm : (V, D)        f32 HBM    (memory_space=pl.ANY, manual DMA)
    out_ref   : (tile_n, D)   f32 VMEM   (pipelined output block)
    sem       : scalar DMA semaphore shared by all row copies of this tile.
    """
    base = pl.program_id(0) * tile_n

    # Issue all row DMAs (HBM row -> output VMEM row); they proceed in parallel.
    # Unrolled so both scalar slots can co-issue address math / descriptors.
    def issue_one(r, carry):
        row = ids_ref[base + r]
        pltpu.make_async_copy(
            table_hbm.at[pl.ds(row, 1)],   # (1, D) source row in HBM
            out_ref.at[pl.ds(r, 1)],       # (1, D) destination row in VMEM
            sem,
        ).start()
        return carry

    lax.fori_loop(0, tile_n, issue_one, None, unroll=_ISSUE_UNROLL)

    # Single consolidated drain: DMA semaphores count bytes, so one descriptor
    # covering the whole (tile_n, D) tile accounts for every row copy above.
    # (.wait() only uses the dst ref + semaphore; the src here is a dummy.)
    pltpu.make_async_copy(out_ref, out_ref, sem).wait()


def _embed_dma(ids, table, tile_n, n_pad):
    v, d = table.shape
    grid_spec = pltpu.PrefetchScalarGridSpec(
        num_scalar_prefetch=1,                         # ids -> SMEM
        grid=(n_pad // tile_n,),
        in_specs=[pl.BlockSpec(memory_space=pl.ANY)],  # table stays in HBM
        out_specs=pl.BlockSpec((tile_n, d), lambda t, ids: (t, 0)),
        scratch_shapes=[pltpu.SemaphoreType.DMA(())],
    )
    return pl.pallas_call(
        functools.partial(_dma_gather_kernel, tile_n=tile_n),
        out_shape=jax.ShapeDtypeStruct((n_pad, d), table.dtype),
        grid_spec=grid_spec,
        compiler_params=pltpu.CompilerParams(dimension_semantics=("parallel",)),
    )(ids, table)


# ---------------------------------------------------------------------------
# Public wrapper (matches embed.forward(xc, xw) with EMBED={'lookup': 300}).
# ---------------------------------------------------------------------------
def embed_forward(xc, xw, word_embed_table, method=None):
    """Pallas equivalent of embed.forward(xc, xw).  Returns (B, S, 300).

    xc is accepted for API parity but unused (no char model configured).
    method: None (auto), "onehot" (VMEM/MXU fast path), or "dma" (HBM gather).
    """
    del xc
    b, s = xw.shape
    v, d = word_embed_table.shape
    n = b * s

    # Clamp ids so a data-dependent HBM gather can never read out of bounds.
    # (PyTorch would raise on an out-of-range id; we clamp to V-1 instead.)
    ids = jnp.clip(xw.reshape(n).astype(jnp.int32), 0, v - 1)

    tile_n = min(_MAX_TILE_N, _round_up(n, _SUBLANES))
    n_pad = _round_up(n, tile_n)
    if n_pad != n:
        ids = jnp.pad(ids, (0, n_pad - n), constant_values=PAD_IDX)

    if method is None:
        method = "onehot" if v <= _ONEHOT_MAX_VOCAB else "dma"
    if method == "onehot":
        out = _embed_onehot(ids, word_embed_table, tile_n, n_pad)
    elif method == "dma":
        out = _embed_dma(ids, word_embed_table, tile_n, n_pad)
    else:
        raise ValueError(f"unknown method: {method}")

    if n_pad != n:
        out = out[:n]          # row slice only; last dim is already exactly D
    return out.reshape(b, s, d)


def init_word_embedding(key, wti_size, dim=EMBED_DIM, dtype=jnp.float32):
    # nn.Embedding default init: N(0, 1); padding_idx row is zeroed (forward semantics).
    table = jax.random.normal(key, (wti_size, dim), dtype=dtype)
    table = table.at[PAD_IDX].set(0.0)
    return table


if __name__ == "__main__":
    key = jax.random.PRNGKey(0)
    k_tab, k_xw, k_xc = jax.random.split(key, 3)

    batch, seq_len, char_len = 2, 8, 6
    cti_size, wti_size = 32, 64

    # Deterministic parameters and inputs.
    word_embed_table = init_word_embedding(k_tab, wti_size)
    xw = jax.random.randint(k_xw, (batch, seq_len), 0, wti_size, dtype=jnp.int32)
    xc = jax.random.randint(
        k_xc, (batch, seq_len, char_len), 0, cti_size, dtype=jnp.int32
    )  # unused: no char-cnn / char-rnn in EMBED config

    ref = word_embed_table[xw]

    # Auto dispatch (small vocab -> VMEM-resident one-hot MXU path).
    h = embed_forward(xc, xw, word_embed_table)
    h = jax.block_until_ready(h)
    assert h.shape == (batch, seq_len, EMBED_DIM), h.shape
    assert jnp.allclose(h, ref, atol=1e-5, rtol=1e-5), "onehot path mismatch"

    # Also exercise the general HBM DMA-gather path (used for large vocabs).
    h_dma = embed_forward(xc, xw, word_embed_table, method="dma")
    h_dma = jax.block_until_ready(h_dma)
    assert h_dma.shape == (batch, seq_len, EMBED_DIM), h_dma.shape
    assert jnp.allclose(h_dma, ref, atol=1e-6), "dma path mismatch"

    print("KERNEL_OK")
</pallas_src>

<mosaic_0001>
module attributes {stable_mosaic.version = 11 : i64} {
  func.func @_onehot_gather_kernel(%arg0: i32, %arg1: memref<16x1xi32, #tpu.memory_space<vmem>>, %arg2: memref<64x300xf32, #tpu.memory_space<vmem>>, %arg3: memref<16x300xf32, #tpu.memory_space<vmem>>) attributes {dimension_semantics = [#tpu.dimension_semantics<parallel>], iteration_bounds = array<i64: 1>, scalar_prefetch = 0 : i64, scratch_operands = 0 : i64, tpu.core_type = #tpu.core_type<tc>, window_params = [{transform_indices = @transform_0, window_bounds = array<i64: 16, 1>}, {pipeline_mode = #tpu.pipeline_mode<synchronous>, transform_indices = @transform_1, window_bounds = array<i64: 64, 300>}, {transform_indices = @transform_2, window_bounds = array<i64: 16, 300>}]} {
    %0 = tpu.iota {dimensions = array<i32: 1>} : vector<16x64xi32>
    %c0 = arith.constant 0 : index
    %c0_0 = arith.constant 0 : index
    %1 = vector.load %arg1[%c0, %c0_0] : memref<16x1xi32, #tpu.memory_space<vmem>>, vector<16x1xi32>
    %2 = vector.broadcast %1 : vector<16x1xi32> to vector<16x64xi32>
    %3 = arith.cmpi eq, %2, %0 : vector<16x64xi32>
    %4 = arith.extui %3 : vector<16x64xi1> to vector<16x64xi32>
    %5 = arith.sitofp %4 : vector<16x64xi32> to vector<16x64xf32>
    %c0_1 = arith.constant 0 : index
    %c0_2 = arith.constant 0 : index
    %6 = vector.load %arg2[%c0_1, %c0_2] : memref<64x300xf32, #tpu.memory_space<vmem>>, vector<64x300xf32>
    %cst = arith.constant dense<0.000000e+00> : vector<16x300xf32>
    %7 = tpu.matmul %5, %6, %cst {dimension_numbers = #tpu.dot_dimension_numbers<[1], [0], [0], [1], [0, 0, 1, 1], [], []>, precision = #tpu.contract_precision<fp32>} : vector<16x64xf32>, vector<64x300xf32>, vector<16x300xf32> -> vector<16x300xf32>
    %c0_3 = arith.constant 0 : index
    %c0_4 = arith.constant 0 : index
    %8 = vector.load %arg3[%c0_3, %c0_4] : memref<16x300xf32, #tpu.memory_space<vmem>>, vector<16x300xf32>
    tpu.vector_store %arg3[%c0_3, %c0_4], %7 {strides = array<i32>} : memref<16x300xf32, #tpu.memory_space<vmem>>, vector<16x300xf32>,
    return
  }
  func.func @transform_0(%arg0: i32) -> (i32, i32) {
    %c0_i32 = arith.constant 0 : i32
    %c0_i32_0 = arith.constant 0 : i32
    return %arg0, %c0_i32 : i32, i32
  }
  func.func @transform_1(%arg0: i32) -> (i32, i32) {
    %c0_i32 = arith.constant 0 : i32
    %c0_i32_0 = arith.constant 0 : i32
    %c0_i32_1 = arith.constant 0 : i32
    return %c0_i32, %c0_i32_0 : i32, i32
  }
  func.func @transform_2(%arg0: i32) -> (i32, i32) {
    %c0_i32 = arith.constant 0 : i32
    %c0_i32_0 = arith.constant 0 : i32
    return %arg0, %c0_i32 : i32, i32
  }
}

</mosaic_0001>

<llo_original>
// kernel: tpu_custom_call.1
$region0: #{tpu_custom_call.1}
  #allocation0 [shape = 'u32[]', space=smem, size = 0x4, offset = 0x4, fixed_abs, tag = 'smem constant byte address 0x4 - core index']
  #allocation1 [shape = 'u32[144,128]{1,0:T(1,128)}', space=vmem, size = 0x12000, scoped, tag = 'internal scratch']
  %s0 = inlined_call_operand.vmem [shape: s32[16,1], index: 0, kind: input, shape index: {}]
  %s1 = inlined_call_operand.hbm [shape: f32[64,300], index: 1, kind: input, shape index: {}]
  %s2 = inlined_call_operand.hbm [shape: f32[16,300], index: 2, kind: output, shape index: {}]
  %s3 = sld [smem:[#allocation0]]
  $region22: #{tpu_custom_call.1} parent=0
    _
  %s5 = ssub.s32 1, %s3
  %s6 = scalar_select 0, %s5, %s3
  $region1: #{tpu_custom_call.1} parent=0
    #allocation2 [shape = 'u8[98304]{0}', space=vmem, size = 0x18000, scoped, tag = 'input window, operand 1, single buffered']
    #allocation3 [shape = 's32[1]{0}', space=sflag, size = 0x4, scoped, tag = 'scoped memory for tpu_custom_call.1']
    #allocation4 [shape = 's32[1]{0}', space=sflag, size = 0x4, scoped, tag = 'scoped memory for tpu_custom_call.1']
    #allocation5 [shape = 'u8[24576]{0}', space=vmem, size = 0x6000, scoped, tag = 'output window, operand 0, single buffered']
    %7 = vsyncpa [#allocation3], 0
    %8 = vsyncpa [#allocation4], 0
    // Predicated region
    $region2: #{tpu_custom_call.1} parent=1 // pred_check
      _
    $region3: #{tpu_custom_call.1} parent=1 // pred_check_branch
      %10 = sbr.rel (0) target = $region5
    $region4: #{tpu_custom_call.1} parent=1 // pred_region
      _
    $region5: #{tpu_custom_call.1} parent=1 // pred_fallthru
      _
    // Predicated region
    $region6: #{tpu_custom_call.1} parent=1 // pred_check
      _
    $region7: #{tpu_custom_call.1} parent=1 // pred_check_branch
      %12 = sbr.rel (0) target = $region9
    $region8: #{tpu_custom_call.1} parent=1 // pred_region
      %s14 = ssub.s32 3072, 3072
      %15 = vsyncadd [#allocation3], %s14
      %s16 = sshll.u32 [#allocation2], 4
      %s17 = int_to_ptr.vmem [resolvable:$true] %s16
      %22 = dma.hbm_to_vmem [thread:$0]  %s1, 3072, %s17, [#allocation3], 384, 384, 24
    $region9: #{tpu_custom_call.1} parent=1 // pred_fallthru
      _
    // Predicated region
    $region10: #{tpu_custom_call.1} parent=1 // pred_check
      _
    $region11: #{tpu_custom_call.1} parent=1 // pred_check_branch
      %24 = sbr.rel (0) target = $region13
    $region12: #{tpu_custom_call.1} parent=1 // pred_region
      %25 = dma.done [#allocation3], 3072
    $region13: #{tpu_custom_call.1} parent=1 // pred_fallthru
      _
    %v26 = vlaneseq
    %v27 = vand.u32 %v26, 127
    %v28 = vld [vmem:[%s0] sm:$0xff]
    %v29 = vld [vmem:[%s0 + $0x8] sm:$0xff]
    %30 = vset.pattern.permute.xlu0 0
    %31 = vperm.xlu0 %30, %v28
    %v32 = vpop.permute.xlu0 %31
    %33 = vset.pattern.permute.xlu0 0
    %34 = vperm.xlu0 %33, %v29
    %v35 = vpop.permute.xlu0 %34
    %vm36 = vcmp.eq.s32.totalorder %v32, %v27
    %vm37 = vcmp.eq.s32.totalorder %v35, %v27
    %v38 = vsel %vm36, 1, 0
    %v39 = vsel %vm37, 1, 0
    %v40 = vcvt.s32.f32 %v38
    %v41 = vcvt.s32.f32 %v39
    %v42 = vld [vmem:[#allocation2] sm:$0xff]
    %v43 = vld [vmem:[#allocation2 + $0x8] sm:$0xff]
    %v44 = vld [vmem:[#allocation2 + $0x10] sm:$0xff]
    %v45 = vld [vmem:[#allocation2 + $0x18] sm:$0xff]
    %v46 = vld [vmem:[#allocation2 + $0x20] sm:$0xff]
    %v47 = vld [vmem:[#allocation2 + $0x28] sm:$0xff]
    %v48 = vld [vmem:[#allocation2 + $0x30] sm:$0xff]
    %v49 = vld [vmem:[#allocation2 + $0x38] sm:$0xff]
    %v50 = vld [vmem:[#allocation2 + $0x40] sm:$0xff]
    %v51 = vld [vmem:[#allocation2 + $0x48] sm:$0xff]
    %v52 = vld [vmem:[#allocation2 + $0x50] sm:$0xff]
    %v53 = vld [vmem:[#allocation2 + $0x58] sm:$0xff]
    %v54 = vld [vmem:[#allocation2 + $0x60] sm:$0xff]
    %v55 = vld [vmem:[#allocation2 + $0x68] sm:$0xff]
    %v56 = vld [vmem:[#allocation2 + $0x70] sm:$0xff]
    %v57 = vld [vmem:[#allocation2 + $0x78] sm:$0xff]
    %v58 = vld [vmem:[#allocation2 + $0x80] sm:$0xff]
    %v59 = vld [vmem:[#allocation2 + $0x88] sm:$0xff]
    %v60 = vld [vmem:[#allocation2 + $0x90] sm:$0xff]
    %v61 = vld [vmem:[#allocation2 + $0x98] sm:$0xff]
    %v62 = vld [vmem:[#allocation2 + $0xa0] sm:$0xff]
    %v63 = vld [vmem:[#allocation2 + $0xa8] sm:$0xff]
    %v64 = vld [vmem:[#allocation2 + $0xb0] sm:$0xff]
    %v65 = vld [vmem:[#allocation2 + $0xb8] sm:$0xff]
    %vm66 = vcmask 523264
    %v68 = vsel %vm66, %v40, 0
    %v71 = vsel %vm66, %v41, 0
    %v73 = vand.u32 %v43, 4294901760
    %74 = vmatprep.subr.mxu0 %v73
    %v75 = vand.u32 %v42, 4294901760
    %76 = vmatpush1.msra.mxu0 %v75
    %v77 = vand.u32 %v46, 4294901760
    %78 = vmatprep.subr.mxu0 %v77
    %v79 = vand.u32 %v45, 4294901760
    %80 = vmatpush1.msra.mxu0 %v79
    %v81 = vand.u32 %v49, 4294901760
    %82 = vmatprep.subr.mxu0 %v81
    %v83 = vand.u32 %v48, 4294901760
    %84 = vmatpush1.msra.mxu0 %v83
    %v85 = vand.u32 %v52, 4294901760
    %86 = vmatprep.subr.mxu0 %v85
    %v87 = vand.u32 %v51, 4294901760
    %88 = vmatpush1.msra.mxu0 %v87
    %v89 = vand.u32 %v55, 4294901760
    %90 = vmatprep.subr.mxu0 %v89
    %v91 = vand.u32 %v54, 4294901760
    %92 = vmatpush1.msra.mxu0 %v91
    %v93 = vand.u32 %v58, 4294901760
    %94 = vmatprep.subr.mxu0 %v93
    %v95 = vand.u32 %v57, 4294901760
    %96 = vmatpush1.msra.mxu0 %v95
    %v97 = vand.u32 %v61, 4294901760
    %98 = vmatprep.subr.mxu0 %v97
    %v99 = vand.u32 %v60, 4294901760
    %100 = vmatpush1.msra.mxu0 %v99
    %v101 = vand.u32 %v64, 4294901760
    %102 = vmatprep.subr.mxu0 %v101
    %v103 = vand.u32 %v63, 4294901760
    %104 = vmatpush1.msra.mxu0 %v103
    %105 = vmatprep.subr.mxu0 0.0
    %106 = vmatpush1.msra.mxu0 0.0
    %107 = vmatprep.subr.mxu0 0.0
    %108 = vmatpush1.msra.mxu0 0.0
    %109 = vmatprep.subr.mxu0 0.0
    %110 = vmatpush1.msra.mxu0 0.0
    %111 = vmatprep.subr.mxu0 0.0
    %112 = vmatpush1.msra.mxu0 0.0
    %113 = vmatprep.subr.mxu0 0.0
    %114 = vmatpush1.msra.mxu0 0.0
    %115 = vmatprep.subr.mxu0 0.0
    %116 = vmatpush1.msra.mxu0 0.0
    %117 = vmatprep.subr.mxu0 0.0
    %118 = vmatpush1.msra.mxu0 0.0
    %119 = vmatprep.subr.mxu0 0.0
    %120 = vmatpush1.msra.mxu0 0.0
    %121 = vmatprep.subr.mxu0 0.0
    %122 = vmatpush1.msra.mxu0 0.0
    %123 = vmatprep.subr.mxu0 0.0
    %124 = vmatpush1.msra.mxu0 0.0
    %125 = vmatprep.subr.mxu0 0.0
    %126 = vmatpush1.msra.mxu0 0.0
    %127 = vmatprep.subr.mxu0 0.0
    %128 = vmatpush1.msra.mxu0 0.0
    %129 = vmatprep.subr.mxu0 0.0
    %130 = vmatpush1.msra.mxu0 0.0
    %131 = vmatprep.subr.mxu0 0.0
    %132 = vmatpush1.msra.mxu0 0.0
    %133 = vmatprep.subr.mxu0 0.0
    %134 = vmatpush1.msra.mxu0 0.0
    %135 = vmatprep.subr.mxu0 0.0
    %136 = vmatpush1.msra.mxu0 0.0
    %137 = vmatprep.subr.mxu0 0.0
    %138 = vmatpush1.msra.mxu0 0.0
    %139 = vmatprep.subr.mxu0 0.0
    %140 = vmatpush1.msra.mxu0 0.0
    %141 = vmatprep.subr.mxu0 0.0
    %142 = vmatpush1.msra.mxu0 0.0
    %143 = vmatprep.subr.mxu0 0.0
    %144 = vmatpush1.msra.mxu0 0.0
    %145 = vmatprep.subr.mxu0 0.0
    %146 = vmatpush1.msra.mxu0 0.0
    %147 = vmatprep.subr.mxu0 0.0
    %148 = vmatpush1.msra.mxu0 0.0
    %149 = vmatprep.subr.mxu0 0.0
    %150 = vmatpush1.msra.mxu0 0.0
    %151 = vmatprep.subr.mxu0 0.0
    %152 = vmatpush1.msra.mxu0 0.0
    %153 = vmatprep.mubr.f32.mxu0 0.0
    %v154 = vand.u32 %v68, 4294901760
    %v155 = vsub.f32 %v68, %v154
    %v156 = vand.u32 %v155, 4294901760
    %v157 = vsub.f32 %v155, %v156
    %v158 = vand.u32 %v157, 4294901760
    %159 = vmatmul.mubr.f32.gmra.mrb[0].mxu0 %v158
    %v160 = vpop.f32.mrb[0].mxu0
    %v161 = vadd.f32 0.0, %v160
    %v162 = vpop.f32.mrb[0].mxu0
    %v163 = vadd.f32 0.0, %v162
    %164 = vmatprep.mubr.f32.mxu0 0.0
    %v165 = vand.u32 %v71, 4294901760
    %v166 = vsub.f32 %v71, %v165
    %v167 = vand.u32 %v166, 4294901760
    %v168 = vsub.f32 %v166, %v167
    %v169 = vand.u32 %v168, 4294901760
    %170 = vmatmul.mubr.f32.gmra.mrb[0].mxu0 %v169
    %v171 = vpop.f32.mrb[0].mxu0
    %v172 = vadd.f32 0.0, %v171
    %v173 = vpop.f32.mrb[0].mxu0
    %v174 = vadd.f32 0.0, %v173
    %175 = vdwg.mxu0
    %v176 = vand.u32 %v43, 4294901760
    %v177 = vsub.f32 %v43, %v176
    %v178 = vand.u32 %v177, 4294901760
    %v179 = vsub.f32 %v177, %v178
    %v180 = vand.u32 %v179, 4294901760
    %181 = vmatprep.subr.mxu0 %v180
    %v182 = vand.u32 %v42, 4294901760
    %v183 = vsub.f32 %v42, %v182
    %v184 = vand.u32 %v183, 4294901760
    %v185 = vsub.f32 %v183, %v184
    %v186 = vand.u32 %v185, 4294901760
    %187 = vmatpush1.msra.mxu0 %v186
    %v188 = vand.u32 %v46, 4294901760
    %v189 = vsub.f32 %v46, %v188
    %v190 = vand.u32 %v189, 4294901760
    %v191 = vsub.f32 %v189, %v190
    %v192 = vand.u32 %v191, 4294901760
    %193 = vmatprep.subr.mxu0 %v192
    %v194 = vand.u32 %v45, 4294901760
    %v195 = vsub.f32 %v45, %v194
    %v196 = vand.u32 %v195, 4294901760
    %v197 = vsub.f32 %v195, %v196
    %v198 = vand.u32 %v197, 4294901760
    %199 = vmatpush1.msra.mxu0 %v198
    %v200 = vand.u32 %v49, 4294901760
    %v201 = vsub.f32 %v49, %v200
    %v202 = vand.u32 %v201, 4294901760
    %v203 = vsub.f32 %v201, %v202
    %v204 = vand.u32 %v203, 4294901760
    %205 = vmatprep.subr.mxu0 %v204
    %v206 = vand.u32 %v48, 4294901760
    %v207 = vsub.f32 %v48, %v206
    %v208 = vand.u32 %v207, 4294901760
    %v209 = vsub.f32 %v207, %v208
    %v210 = vand.u32 %v209, 4294901760
    %211 = vmatpush1.msra.mxu0 %v210
    %v212 = vand.u32 %v52, 4294901760
    %v213 = vsub.f32 %v52, %v212
    %v214 = vand.u32 %v213, 4294901760
    %v215 = vsub.f32 %v213, %v214
    %v216 = vand.u32 %v215, 4294901760
    %217 = vmatprep.subr.mxu0 %v216
    %v218 = vand.u32 %v51, 4294901760
    %v219 = vsub.f32 %v51, %v218
    %v220 = vand.u32 %v219, 4294901760
    %v221 = vsub.f32 %v219, %v220
    %v222 = vand.u32 %v221, 4294901760
    %223 = vmatpush1.msra.mxu0 %v222
    %v224 = vand.u32 %v55, 4294901760
    %v225 = vsub.f32 %v55, %v224
    %v226 = vand.u32 %v225, 4294901760
    %v227 = vsub.f32 %v225, %v226
    %v228 = vand.u32 %v227, 4294901760
    %229 = vmatprep.subr.mxu0 %v228
    %v230 = vand.u32 %v54, 4294901760
    %v231 = vsub.f32 %v54, %v230
    %v232 = vand.u32 %v231, 4294901760
    %v233 = vsub.f32 %v231, %v232
    %v234 = vand.u32 %v233, 4294901760
    %235 = vmatpush1.msra.mxu0 %v234
    %v236 = vand.u32 %v58, 4294901760
    %v237 = vsub.f32 %v58, %v236
    %v238 = vand.u32 %v237, 4294901760
    %v239 = vsub.f32 %v237, %v238
    %v240 = vand.u32 %v239, 4294901760
    %241 = vmatprep.subr.mxu0 %v240
    %v242 = vand.u32 %v57, 4294901760
    %v243 = vsub.f32 %v57, %v242
    %v244 = vand.u32 %v243, 4294901760
    %v245 = vsub.f32 %v243, %v244
    %v246 = vand.u32 %v245, 4294901760
    %247 = vmatpush1.msra.mxu0 %v246
    %v248 = vand.u32 %v61, 4294901760
    %v249 = vsub.f32 %v61, %v248
    %v250 = vand.u32 %v249, 4294901760
    %v251 = vsub.f32 %v249, %v250
    %v252 = vand.u32 %v251, 4294901760
    %253 = vmatprep.subr.mxu0 %v252
    %v254 = vand.u32 %v60, 4294901760
    %v255 = vsub.f32 %v60, %v254
    %v256 = vand.u32 %v255, 4294901760
    %v257 = vsub.f32 %v255, %v256
    %v258 = vand.u32 %v257, 4294901760
    %259 = vmatpush1.msra.mxu0 %v258
    %v260 = vand.u32 %v64, 4294901760
    %v261 = vsub.f32 %v64, %v260
    %v262 = vand.u32 %v261, 4294901760
    %v263 = vsub.f32 %v261, %v262
    %v264 = vand.u32 %v263, 4294901760
    %265 = vmatprep.subr.mxu0 %v264
    %v266 = vand.u32 %v63, 4294901760
    %v267 = vsub.f32 %v63, %v266
    %v268 = vand.u32 %v267, 4294901760
    %v269 = vsub.f32 %v267, %v268
    %v270 = vand.u32 %v269, 4294901760
    %271 = vmatpush1.msra.mxu0 %v270
    %272 = vmatprep.subr.mxu0 0.0
    %273 = vmatpush1.msra.mxu0 0.0
    %274 = vmatprep.subr.mxu0 0.0
    %275 = vmatpush1.msra.mxu0 0.0
    %276 = vmatprep.subr.mxu0 0.0
    %277 = vmatpush1.msra.mxu0 0.0
    %278 = vmatprep.subr.mxu0 0.0
    %279 = vmatpush1.msra.mxu0 0.0
    %280 = vmatprep.subr.mxu0 0.0
    %281 = vmatpush1.msra.mxu0 0.0
    %282 = vmatprep.subr.mxu0 0.0
    %283 = vmatpush1.msra.mxu0 0.0
    %284 = vmatprep.subr.mxu0 0.0
    %285 = vmatpush1.msra.mxu0 0.0
    %286 = vmatprep.subr.mxu0 0.0
    %287 = vmatpush1.msra.mxu0 0.0
    %288 = vmatprep.subr.mxu0 0.0
    %289 = vmatpush1.msra.mxu0 0.0
    %290 = vmatprep.subr.mxu0 0.0
    %291 = vmatpush1.msra.mxu0 0.0
    %292 = vmatprep.subr.mxu0 0.0
    %293 = vmatpush1.msra.mxu0 0.0
    %294 = vmatprep.subr.mxu0 0.0
    %295 = vmatpush1.msra.mxu0 0.0
    %296 = vmatprep.subr.mxu0 0.0
    %297 = vmatpush1.msra.mxu0 0.0
    %298 = vmatprep.subr.mxu0 0.0
    %299 = vmatpush1.msra.mxu0 0.0
    %300 = vmatprep.subr.mxu0 0.0
    %301 = vmatpush1.msra.mxu0 0.0
    %302 = vmatprep.subr.mxu0 0.0
    %303 = vmatpush1.msra.mxu0 0.0
    %304 = vmatprep.subr.mxu0 0.0
    %305 = vmatpush1.msra.mxu0 0.0
    %306 = vmatprep.subr.mxu0 0.0
    %307 = vmatpush1.msra.mxu0 0.0
    %308 = vmatprep.subr.mxu0 0.0
    %309 = vmatpush1.msra.mxu0 0.0
    %310 = vmatprep.subr.mxu0 0.0
    %311 = vmatpush1.msra.mxu0 0.0
    %312 = vmatprep.subr.mxu0 0.0
    %313 = vmatpush1.msra.mxu0 0.0
    %314 = vmatprep.subr.mxu0 0.0
    %315 = vmatpush1.msra.mxu0 0.0
    %316 = vmatprep.subr.mxu0 0.0
    %317 = vmatpush1.msra.mxu0 0.0
    %318 = vmatprep.subr.mxu0 0.0
    %319 = vmatpush1.msra.mxu0 0.0
    %320 = vmatprep.mubr.f32.mxu0 0.0
    %v321 = vand.u32 %v68, 4294901760
    %322 = vmatmul.mubr.f32.gmra.mrb[0].mxu0 %v321
    %v323 = vpop.f32.mrb[0].mxu0
    %v324 = vadd.f32 %v161, %v323
    %v325 = vpop.f32.mrb[0].mxu0
    %v326 = vadd.f32 %v163, %v325
    %327 = vmatprep.mubr.f32.mxu0 0.0
    %v328 = vand.u32 %v71, 4294901760
    %329 = vmatmul.mubr.f32.gmra.mrb[0].mxu0 %v328
    %v330 = vpop.f32.mrb[0].mxu0
    %v331 = vadd.f32 %v172, %v330
    %v332 = vpop.f32.mrb[0].mxu0
    %v333 = vadd.f32 %v174, %v332
    %334 = vdwg.mxu0
    %v335 = vand.u32 %v43, 4294901760
    %v336 = vsub.f32 %v43, %v335
    %337 = vmatprep.subr.mxu0 %v336
    %v338 = vand.u32 %v42, 4294901760
    %v339 = vsub.f32 %v42, %v338
    %340 = vmatpush1.msra.mxu0 %v339
    %v341 = vand.u32 %v46, 4294901760
    %v342 = vsub.f32 %v46, %v341
    %343 = vmatprep.subr.mxu0 %v342
    %v344 = vand.u32 %v45, 4294901760
    %v345 = vsub.f32 %v45, %v344
    %346 = vmatpush1.msra.mxu0 %v345
    %v347 = vand.u32 %v49, 4294901760
    %v348 = vsub.f32 %v49, %v347
    %349 = vmatprep.subr.mxu0 %v348
    %v350 = vand.u32 %v48, 4294901760
    %v351 = vsub.f32 %v48, %v350
    %352 = vmatpush1.msra.mxu0 %v351
    %v353 = vand.u32 %v52, 4294901760
    %v354 = vsub.f32 %v52, %v353
    %355 = vmatprep.subr.mxu0 %v354
    %v356 = vand.u32 %v51, 4294901760
    %v357 = vsub.f32 %v51, %v356
    %358 = vmatpush1.msra.mxu0 %v357
    %v359 = vand.u32 %v55, 4294901760
    %v360 = vsub.f32 %v55, %v359
    %361 = vmatprep.subr.mxu0 %v360
    %v362 = vand.u32 %v54, 4294901760
    %v363 = vsub.f32 %v54, %v362
    %364 = vmatpush1.msra.mxu0 %v363
    %v365 = vand.u32 %v58, 4294901760
    %v366 = vsub.f32 %v58, %v365
    %367 = vmatprep.subr.mxu0 %v366
    %v368 = vand.u32 %v57, 4294901760
    %v369 = vsub.f32 %v57, %v368
    %370 = vmatpush1.msra.mxu0 %v369
    %v371 = vand.u32 %v61, 4294901760
    %v372 = vsub.f32 %v61, %v371
    %373 = vmatprep.subr.mxu0 %v372
    %v374 = vand.u32 %v60, 4294901760
    %v375 = vsub.f32 %v60, %v374
    %376 = vmatpush1.msra.mxu0 %v375
    %v377 = vand.u32 %v64, 4294901760
    %v378 = vsub.f32 %v64, %v377
    %379 = vmatprep.subr.mxu0 %v378
    %v380 = vand.u32 %v63, 4294901760
    %v381 = vsub.f32 %v63, %v380
    %382 = vmatpush1.msra.mxu0 %v381
    %383 = vmatprep.subr.mxu0 0.0
    %384 = vmatpush1.msra.mxu0 0.0
    %385 = vmatprep.subr.mxu0 0.0
    %386 = vmatpush1.msra.mxu0 0.0
    %387 = vmatprep.subr.mxu0 0.0
    %388 = vmatpush1.msra.mxu0 0.0
    %389 = vmatprep.subr.mxu0 0.0
    %390 = vmatpush1.msra.mxu0 0.0
    %391 = vmatprep.subr.mxu0 0.0
    %392 = vmatpush1.msra.mxu0 0.0
    %393 = vmatprep.subr.mxu0 0.0
    %394 = vmatpush1.msra.mxu0 0.0
    %395 = vmatprep.subr.mxu0 0.0
    %396 = vmatpush1.msra.mxu0 0.0
    %397 = vmatprep.subr.mxu0 0.0
    %398 = vmatpush1.msra.mxu0 0.0
    %399 = vmatprep.subr.mxu0 0.0
    %400 = vmatpush1.msra.mxu0 0.0
    %401 = vmatprep.subr.mxu0 0.0
    %402 = vmatpush1.msra.mxu0 0.0
    %403 = vmatprep.subr.mxu0 0.0
    %404 = vmatpush1.msra.mxu0 0.0
    %405 = vmatprep.subr.mxu0 0.0
    %406 = vmatpush1.msra.mxu0 0.0
    %407 = vmatprep.subr.mxu0 0.0
    %408 = vmatpush1.msra.mxu0 0.0
    %409 = vmatprep.subr.mxu0 0.0
    %410 = vmatpush1.msra.mxu0 0.0
    %411 = vmatprep.subr.mxu0 0.0
    %412 = vmatpush1.msra.mxu0 0.0
    %413 = vmatprep.subr.mxu0 0.0
    %414 = vmatpush1.msra.mxu0 0.0
    %415 = vmatprep.subr.mxu0 0.0
    %416 = vmatpush1.msra.mxu0 0.0
    %417 = vmatprep.subr.mxu0 0.0
    %418 = vmatpush1.msra.mxu0 0.0
    %419 = vmatprep.subr.mxu0 0.0
    %420 = vmatpush1.msra.mxu0 0.0
    %421 = vmatprep.subr.mxu0 0.0
    %422 = vmatpush1.msra.mxu0 0.0
    %423 = vmatprep.subr.mxu0 0.0
    %424 = vmatpush1.msra.mxu0 0.0
    %425 = vmatprep.subr.mxu0 0.0
    %426 = vmatpush1.msra.mxu0 0.0
    %427 = vmatprep.subr.mxu0 0.0
    %428 = vmatpush1.msra.mxu0 0.0
    %429 = vmatprep.subr.mxu0 0.0
    %430 = vmatpush1.msra.mxu0 0.0
    %431 = vmatprep.mubr.f32.mxu0 0.0
    %v432 = vand.u32 %v68, 4294901760
    %v433 = vsub.f32 %v68, %v432
    %434 = vmatmul.mubr.f32.gmra.mrb[0].mxu0 %v433
    %v435 = vpop.f32.mrb[0].mxu0
    %v436 = vadd.f32 %v324, %v435
    %v437 = vpop.f32.mrb[0].mxu0
    %v438 = vadd.f32 %v326, %v437
    %439 = vmatprep.mubr.f32.mxu0 0.0
    %v440 = vand.u32 %v71, 4294901760
    %v441 = vsub.f32 %v71, %v440
    %442 = vmatmul.mubr.f32.gmra.mrb[0].mxu0 %v441
    %v443 = vpop.f32.mrb[0].mxu0
    %v444 = vadd.f32 %v331, %v443
    %v445 = vpop.f32.mrb[0].mxu0
    %v446 = vadd.f32 %v333, %v445
    %447 = vdwg.mxu0
    %v448 = vand.u32 %v43, 4294901760
    %449 = vmatprep.subr.mxu0 %v448
    %v450 = vand.u32 %v42, 4294901760
    %451 = vmatpush1.msra.mxu0 %v450
    %v452 = vand.u32 %v46, 4294901760
    %453 = vmatprep.subr.mxu0 %v452
    %v454 = vand.u32 %v45, 4294901760
    %455 = vmatpush1.msra.mxu0 %v454
    %v456 = vand.u32 %v49, 4294901760
    %457 = vmatprep.subr.mxu0 %v456
    %v458 = vand.u32 %v48, 4294901760
    %459 = vmatpush1.msra.mxu0 %v458
    %v460 = vand.u32 %v52, 4294901760
    %461 = vmatprep.subr.mxu0 %v460
    %v462 = vand.u32 %v51, 4294901760
    %463 = vmatpush1.msra.mxu0 %v462
    %v464 = vand.u32 %v55, 4294901760
    %465 = vmatprep.subr.mxu0 %v464
    %v466 = vand.u32 %v54, 4294901760
    %467 = vmatpush1.msra.mxu0 %v466
    %v468 = vand.u32 %v58, 4294901760
    %469 = vmatprep.subr.mxu0 %v468
    %v470 = vand.u32 %v57, 4294901760
    %471 = vmatpush1.msra.mxu0 %v470
    %v472 = vand.u32 %v61, 4294901760
    %473 = vmatprep.subr.mxu0 %v472
    %v474 = vand.u32 %v60, 4294901760
    %475 = vmatpush1.msra.mxu0 %v474
    %v476 = vand.u32 %v64, 4294901760
    %477 = vmatprep.subr.mxu0 %v476
    %v478 = vand.u32 %v63, 4294901760
    %479 = vmatpush1.msra.mxu0 %v478
    %480 = vmatprep.subr.mxu0 0.0
    %481 = vmatpush1.msra.mxu0 0.0
    %482 = vmatprep.subr.mxu0 0.0
    %483 = vmatpush1.msra.mxu0 0.0
    %484 = vmatprep.subr.mxu0 0.0
    %485 = vmatpush1.msra.mxu0 0.0
    %486 = vmatprep.subr.mxu0 0.0
    %487 = vmatpush1.msra.mxu0 0.0
    %488 = vmatprep.subr.mxu0 0.0
    %489 = vmatpush1.msra.mxu0 0.0
    %490 = vmatprep.subr.mxu0 0.0
    %491 = vmatpush1.msra.mxu0 0.0
    %492 = vmatprep.subr.mxu0 0.0
    %493 = vmatpush1.msra.mxu0 0.0
    %494 = vmatprep.subr.mxu0 0.0
    %495 = vmatpush1.msra.mxu0 0.0
    %496 = vmatprep.subr.mxu0 0.0
    %497 = vmatpush1.msra.mxu0 0.0
    %498 = vmatprep.subr.mxu0 0.0
    %499 = vmatpush1.msra.mxu0 0.0
    %500 = vmatprep.subr.mxu0 0.0
    %501 = vmatpush1.msra.mxu0 0.0
    %502 = vmatprep.subr.mxu0 0.0
    %503 = vmatpush1.msra.mxu0 0.0
    %504 = vmatprep.subr.mxu0 0.0
    %505 = vmatpush1.msra.mxu0 0.0
    %506 = vmatprep.subr.mxu0 0.0
    %507 = vmatpush1.msra.mxu0 0.0
    %508 = vmatprep.subr.mxu0 0.0
    %509 = vmatpush1.msra.mxu0 0.0
    %510 = vmatprep.subr.mxu0 0.0
    %511 = vmatpush1.msra.mxu0 0.0
    %512 = vmatprep.subr.mxu0 0.0
    %513 = vmatpush1.msra.mxu0 0.0
    %514 = vmatprep.subr.mxu0 0.0
    %515 = vmatpush1.msra.mxu0 0.0
    %516 = vmatprep.subr.mxu0 0.0
    %517 = vmatpush1.msra.mxu0 0.0
    %518 = vmatprep.subr.mxu0 0.0
    %519 = vmatpush1.msra.mxu0 0.0
    %520 = vmatprep.subr.mxu0 0.0
    %521 = vmatpush1.msra.mxu0 0.0
    %522 = vmatprep.subr.mxu0 0.0
    %523 = vmatpush1.msra.mxu0 0.0
    %524 = vmatprep.subr.mxu0 0.0
    %525 = vmatpush1.msra.mxu0 0.0
    %526 = vmatprep.subr.mxu0 0.0
    %527 = vmatpush1.msra.mxu0 0.0
    %528 = vmatprep.mubr.f32.mxu0 0.0
    %v529 = vand.u32 %v68, 4294901760
    %v530 = vsub.f32 %v68, %v529
    %v531 = vand.u32 %v530, 4294901760
    %532 = vmatmul.mubr.f32.gmra.mrb[0].mxu0 %v531
    %v533 = vpop.f32.mrb[0].mxu0
    %v534 = vadd.f32 %v436, %v533
    %v535 = vpop.f32.mrb[0].mxu0
    %v536 = vadd.f32 %v438, %v535
    %537 = vmatprep.mubr.f32.mxu0 0.0
    %v538 = vand.u32 %v71, 4294901760
    %v539 = vsub.f32 %v71, %v538
    %v540 = vand.u32 %v539, 4294901760
    %541 = vmatmul.mubr.f32.gmra.mrb[0].mxu0 %v540
    %v542 = vpop.f32.mrb[0].mxu0
    %v543 = vadd.f32 %v444, %v542
    %v544 = vpop.f32.mrb[0].mxu0
    %v545 = vadd.f32 %v446, %v544
    %546 = vdwg.mxu0
    %v547 = vand.u32 %v43, 4294901760
    %v548 = vsub.f32 %v43, %v547
    %v549 = vand.u32 %v548, 4294901760
    %550 = vmatprep.subr.mxu0 %v549
    %v551 = vand.u32 %v42, 4294901760
    %v552 = vsub.f32 %v42, %v551
    %v553 = vand.u32 %v552, 4294901760
    %554 = vmatpush1.msra.mxu0 %v553
    %v555 = vand.u32 %v46, 4294901760
    %v556 = vsub.f32 %v46, %v555
    %v557 = vand.u32 %v556, 4294901760
    %558 = vmatprep.subr.mxu0 %v557
    %v559 = vand.u32 %v45, 4294901760
    %v560 = vsub.f32 %v45, %v559
    %v561 = vand.u32 %v560, 4294901760
    %562 = vmatpush1.msra.mxu0 %v561
    %v563 = vand.u32 %v49, 4294901760
    %v564 = vsub.f32 %v49, %v563
    %v565 = vand.u32 %v564, 4294901760
    %566 = vmatprep.subr.mxu0 %v565
    %v567 = vand.u32 %v48, 4294901760
    %v568 = vsub.f32 %v48, %v567
    %v569 = vand.u32 %v568, 4294901760
    %570 = vmatpush1.msra.mxu0 %v569
    %v571 = vand.u32 %v52, 4294901760
    %v572 = vsub.f32 %v52, %v571
    %v573 = vand.u32 %v572, 4294901760
    %574 = vmatprep.subr.mxu0 %v573
    %v575 = vand.u32 %v51, 4294901760
    %v576 = vsub.f32 %v51, %v575
    %v577 = vand.u32 %v576, 4294901760
    %578 = vmatpush1.msra.mxu0 %v577
    %v579 = vand.u32 %v55, 4294901760
    %v580 = vsub.f32 %v55, %v579
    %v581 = vand.u32 %v580, 4294901760
    %582 = vmatprep.subr.mxu0 %v581
    %v583 = vand.u32 %v54, 4294901760
    %v584 = vsub.f32 %v54, %v583
    %v585 = vand.u32 %v584, 4294901760
    %586 = vmatpush1.msra.mxu0 %v585
    %v587 = vand.u32 %v58, 4294901760
    %v588 = vsub.f32 %v58, %v587
    %v589 = vand.u32 %v588, 4294901760
    %590 = vmatprep.subr.mxu0 %v589
    %v591 = vand.u32 %v57, 4294901760
    %v592 = vsub.f32 %v57, %v591
    %v593 = vand.u32 %v592, 4294901760
    %594 = vmatpush1.msra.mxu0 %v593
    %v595 = vand.u32 %v61, 4294901760
    %v596 = vsub.f32 %v61, %v595
    %v597 = vand.u32 %v596, 4294901760
    %598 = vmatprep.subr.mxu0 %v597
    %v599 = vand.u32 %v60, 4294901760
    %v600 = vsub.f32 %v60, %v599
    %v601 = vand.u32 %v600, 4294901760
    %602 = vmatpush1.msra.mxu0 %v601
    %v603 = vand.u32 %v64, 4294901760
    %v604 = vsub.f32 %v64, %v603
    %v605 = vand.u32 %v604, 4294901760
    %606 = vmatprep.subr.mxu0 %v605
    %v607 = vand.u32 %v63, 4294901760
    %v608 = vsub.f32 %v63, %v607
    %v609 = vand.u32 %v608, 4294901760
    %610 = vmatpush1.msra.mxu0 %v609
    %611 = vmatprep.subr.mxu0 0.0
    %612 = vmatpush1.msra.mxu0 0.0
    %613 = vmatprep.subr.mxu0 0.0
    %614 = vmatpush1.msra.mxu0 0.0
    %615 = vmatprep.subr.mxu0 0.0
    %616 = vmatpush1.msra.mxu0 0.0
    %617 = vmatprep.subr.mxu0 0.0
    %618 = vmatpush1.msra.mxu0 0.0
    %619 = vmatprep.subr.mxu0 0.0
    %620 = vmatpush1.msra.mxu0 0.0
    %621 = vmatprep.subr.mxu0 0.0
    %622 = vmatpush1.msra.mxu0 0.0
    %623 = vmatprep.subr.mxu0 0.0
    %624 = vmatpush1.msra.mxu0 0.0
    %625 = vmatprep.subr.mxu0 0.0
    %626 = vmatpush1.msra.mxu0 0.0
    %627 = vmatprep.subr.mxu0 0.0
    %628 = vmatpush1.msra.mxu0 0.0
    %629 = vmatprep.subr.mxu0 0.0
    %630 = vmatpush1.msra.mxu0 0.0
    %631 = vmatprep.subr.mxu0 0.0
    %632 = vmatpush1.msra.mxu0 0.0
    %633 = vmatprep.subr.mxu0 0.0
    %634 = vmatpush1.msra.mxu0 0.0
    %635 = vmatprep.subr.mxu0 0.0
    %636 = vmatpush1.msra.mxu0 0.0
    %637 = vmatprep.subr.mxu0 0.0
    %638 = vmatpush1.msra.mxu0 0.0
    %639 = vmatprep.subr.mxu0 0.0
    %640 = vmatpush1.msra.mxu0 0.0
    %641 = vmatprep.subr.mxu0 0.0
    %642 = vmatpush1.msra.mxu0 0.0
    %643 = vmatprep.subr.mxu0 0.0
    %644 = vmatpush1.msra.mxu0 0.0
    %645 = vmatprep.subr.mxu0 0.0
    %646 = vmatpush1.msra.mxu0 0.0
    %647 = vmatprep.subr.mxu0 0.0
    %648 = vmatpush1.msra.mxu0 0.0
    %649 = vmatprep.subr.mxu0 0.0
    %650 = vmatpush1.msra.mxu0 0.0
    %651 = vmatprep.subr.mxu0 0.0
    %652 = vmatpush1.msra.mxu0 0.0
    %653 = vmatprep.subr.mxu0 0.0
    %654 = vmatpush1.msra.mxu0 0.0
    %655 = vmatprep.subr.mxu0 0.0
    %656 = vmatpush1.msra.mxu0 0.0
    %657 = vmatprep.subr.mxu0 0.0
    %658 = vmatpush1.msra.mxu0 0.0
    %659 = vmatprep.mubr.f32.mxu0 0.0
    %v660 = vand.u32 %v68, 4294901760
    %661 = vmatmul.mubr.f32.gmra.mrb[0].mxu0 %v660
    %v662 = vpop.f32.mrb[0].mxu0
    %v663 = vadd.f32 %v534, %v662
    %v664 = vpop.f32.mrb[0].mxu0
    %v665 = vadd.f32 %v536, %v664
    %666 = vmatprep.mubr.f32.mxu0 0.0
    %v667 = vand.u32 %v71, 4294901760
    %668 = vmatmul.mubr.f32.gmra.mrb[0].mxu0 %v667
    %v669 = vpop.f32.mrb[0].mxu0
    %v670 = vadd.f32 %v543, %v669
    %v671 = vpop.f32.mrb[0].mxu0
    %v672 = vadd.f32 %v545, %v671
    %673 = vdwg.mxu0
    %v674 = vand.u32 %v43, 4294901760
    %675 = vmatprep.subr.mxu0 %v674
    %v676 = vand.u32 %v42, 4294901760
    %677 = vmatpush1.msra.mxu0 %v676
    %v678 = vand.u32 %v46, 4294901760
    %679 = vmatprep.subr.mxu0 %v678
    %v680 = vand.u32 %v45, 4294901760
    %681 = vmatpush1.msra.mxu0 %v680
    %v682 = vand.u32 %v49, 4294901760
    %683 = vmatprep.subr.mxu0 %v682
    %v684 = vand.u32 %v48, 4294901760
    %685 = vmatpush1.msra.mxu0 %v684
    %v686 = vand.u32 %v52, 4294901760
    %687 = vmatprep.subr.mxu0 %v686
    %v688 = vand.u32 %v51, 4294901760
    %689 = vmatpush1.msra.mxu0 %v688
    %v690 = vand.u32 %v55, 4294901760
    %691 = vmatprep.subr.mxu0 %v690
    %v692 = vand.u32 %v54, 4294901760
    %693 = vmatpush1.msra.mxu0 %v692
    %v694 = vand.u32 %v58, 4294901760
    %695 = vmatprep.subr.mxu0 %v694
    %v696 = vand.u32 %v57, 4294901760
    %697 = vmatpush1.msra.mxu0 %v696
    %v698 = vand.u32 %v61, 4294901760
    %699 = vmatprep.subr.mxu0 %v698
    %v700 = vand.u32 %v60, 4294901760
    %701 = vmatpush1.msra.mxu0 %v700
    %v702 = vand.u32 %v64, 4294901760
    %703 = vmatprep.subr.mxu0 %v702
    %v704 = vand.u32 %v63, 4294901760
    %705 = vmatpush1.msra.mxu0 %v704
    %706 = vmatprep.subr.mxu0 0.0
    %707 = vmatpush1.msra.mxu0 0.0
    %708 = vmatprep.subr.mxu0 0.0
    %709 = vmatpush1.msra.mxu0 0.0
    %710 = vmatprep.subr.mxu0 0.0
    %711 = vmatpush1.msra.mxu0 0.0
    %712 = vmatprep.subr.mxu0 0.0
    %713 = vmatpush1.msra.mxu0 0.0
    %714 = vmatprep.subr.mxu0 0.0
    %715 = vmatpush1.msra.mxu0 0.0
    %716 = vmatprep.subr.mxu0 0.0
    %717 = vmatpush1.msra.mxu0 0.0
    %718 = vmatprep.subr.mxu0 0.0
    %719 = vmatpush1.msra.mxu0 0.0
    %720 = vmatprep.subr.mxu0 0.0
    %721 = vmatpush1.msra.mxu0 0.0
    %722 = vmatprep.subr.mxu0 0.0
    %723 = vmatpush1.msra.mxu0 0.0
    %724 = vmatprep.subr.mxu0 0.0
    %725 = vmatpush1.msra.mxu0 0.0
    %726 = vmatprep.subr.mxu0 0.0
    %727 = vmatpush1.msra.mxu0 0.0
    %728 = vmatprep.subr.mxu0 0.0
    %729 = vmatpush1.msra.mxu0 0.0
    %730 = vmatprep.subr.mxu0 0.0
    %731 = vmatpush1.msra.mxu0 0.0
    %732 = vmatprep.subr.mxu0 0.0
    %733 = vmatpush1.msra.mxu0 0.0
    %734 = vmatprep.subr.mxu0 0.0
    %735 = vmatpush1.msra.mxu0 0.0
    %736 = vmatprep.subr.mxu0 0.0
    %737 = vmatpush1.msra.mxu0 0.0
    %738 = vmatprep.subr.mxu0 0.0
    %739 = vmatpush1.msra.mxu0 0.0
    %740 = vmatprep.subr.mxu0 0.0
    %741 = vmatpush1.msra.mxu0 0.0
    %742 = vmatprep.subr.mxu0 0.0
    %743 = vmatpush1.msra.mxu0 0.0
    %744 = vmatprep.subr.mxu0 0.0
    %745 = vmatpush1.msra.mxu0 0.0
    %746 = vmatprep.subr.mxu0 0.0
    %747 = vmatpush1.msra.mxu0 0.0
    %748 = vmatprep.subr.mxu0 0.0
    %749 = vmatpush1.msra.mxu0 0.0
    %750 = vmatprep.subr.mxu0 0.0
    %751 = vmatpush1.msra.mxu0 0.0
    %752 = vmatprep.subr.mxu0 0.0
    %753 = vmatpush1.msra.mxu0 0.0
    %754 = vmatprep.mubr.f32.mxu0 0.0
    %v755 = vand.u32 %v68, 4294901760
    %756 = vmatmul.mubr.f32.gmra.mrb[0].mxu0 %v755
    %v757 = vpop.f32.mrb[0].mxu0
    %v758 = vadd.f32 %v663, %v757
    %v759 = vpop.f32.mrb[0].mxu0
    %v760 = vadd.f32 %v665, %v759
    %761 = vmatprep.mubr.f32.mxu0 0.0
    %v762 = vand.u32 %v71, 4294901760
    %763 = vmatmul.mubr.f32.gmra.mrb[0].mxu0 %v762
    %v764 = vpop.f32.mrb[0].mxu0
    %v765 = vadd.f32 %v670, %v764
    %v766 = vpop.f32.mrb[0].mxu0
    %v767 = vadd.f32 %v672, %v766
    %768 = vdwg.mxu0
    %769 = vmatprep.subr.mxu0 0.0
    %v770 = vand.u32 %v44, 4294901760
    %771 = vmatpush1.msra.mxu0 %v770
    %772 = vmatprep.subr.mxu0 0.0
    %v773 = vand.u32 %v47, 4294901760
    %774 = vmatpush1.msra.mxu0 %v773
    %775 = vmatprep.subr.mxu0 0.0
    %v776 = vand.u32 %v50, 4294901760
    %777 = vmatpush1.msra.mxu0 %v776
    %778 = vmatprep.subr.mxu0 0.0
    %v779 = vand.u32 %v53, 4294901760
    %780 = vmatpush1.msra.mxu0 %v779
    %781 = vmatprep.subr.mxu0 0.0
    %v782 = vand.u32 %v56, 4294901760
    %783 = vmatpush1.msra.mxu0 %v782
    %784 = vmatprep.subr.mxu0 0.0
    %v785 = vand.u32 %v59, 4294901760
    %786 = vmatpush1.msra.mxu0 %v785
    %787 = vmatprep.subr.mxu0 0.0
    %v788 = vand.u32 %v62, 4294901760
    %789 = vmatpush1.msra.mxu0 %v788
    %790 = vmatprep.subr.mxu0 0.0
    %v791 = vand.u32 %v65, 4294901760
    %792 = vmatpush1.msra.mxu0 %v791
    %793 = vmatprep.subr.mxu0 0.0
    %794 = vmatpush1.msra.mxu0 0.0
    %795 = vmatprep.subr.mxu0 0.0
    %796 = vmatpush1.msra.mxu0 0.0
    %797 = vmatprep.subr.mxu0 0.0
    %798 = vmatpush1.msra.mxu0 0.0
    %799 = vmatprep.subr.mxu0 0.0
    %800 = vmatpush1.msra.mxu0 0.0
    %801 = vmatprep.subr.mxu0 0.0
    %802 = vmatpush1.msra.mxu0 0.0
    %803 = vmatprep.subr.mxu0 0.0
    %804 = vmatpush1.msra.mxu0 0.0
    %805 = vmatprep.subr.mxu0 0.0
    %806 = vmatpush1.msra.mxu0 0.0
    %807 = vmatprep.subr.mxu0 0.0
    %808 = vmatpush1.msra.mxu0 0.0
    %809 = vmatprep.subr.mxu0 0.0
    %810 = vmatpush1.msra.mxu0 0.0
    %811 = vmatprep.subr.mxu0 0.0
    %812 = vmatpush1.msra.mxu0 0.0
    %813 = vmatprep.subr.mxu0 0.0
    %814 = vmatpush1.msra.mxu0 0.0
    %815 = vmatprep.subr.mxu0 0.0
    %816 = vmatpush1.msra.mxu0 0.0
    %817 = vmatprep.subr.mxu0 0.0
    %818 = vmatpush1.msra.mxu0 0.0
    %819 = vmatprep.subr.mxu0 0.0
    %820 = vmatpush1.msra.mxu0 0.0
    %821 = vmatprep.subr.mxu0 0.0
    %822 = vmatpush1.msra.mxu0 0.0
    %823 = vmatprep.subr.mxu0 0.0
    %824 = vmatpush1.msra.mxu0 0.0
    %825 = vmatprep.subr.mxu0 0.0
    %826 = vmatpush1.msra.mxu0 0.0
    %827 = vmatprep.subr.mxu0 0.0
    %828 = vmatpush1.msra.mxu0 0.0
    %829 = vmatprep.subr.mxu0 0.0
    %830 = vmatpush1.msra.mxu0 0.0
    %831 = vmatprep.subr.mxu0 0.0
    %832 = vmatpush1.msra.mxu0 0.0
    %833 = vmatprep.subr.mxu0 0.0
    %834 = vmatpush1.msra.mxu0 0.0
    %835 = vmatprep.subr.mxu0 0.0
    %836 = vmatpush1.msra.mxu0 0.0
    %837 = vmatprep.subr.mxu0 0.0
    %838 = vmatpush1.msra.mxu0 0.0
    %839 = vmatprep.subr.mxu0 0.0
    %840 = vmatpush1.msra.mxu0 0.0
    %841 = vmatprep.mubr.f32.mxu0 0.0
    %v842 = vand.u32 %v68, 4294901760
    %v843 = vsub.f32 %v68, %v842
    %v844 = vand.u32 %v843, 4294901760
    %v845 = vsub.f32 %v843, %v844
    %v846 = vand.u32 %v845, 4294901760
    %847 = vmatmul.mubr.f32.gmra.mrb[0].mxu0 %v846
    %v848 = vpop.f32.mrb[0].mxu0
    %v849 = vadd.f32 0.0, %v848
    %v850 = vpop.f32.mrb[0].mxu0
    %851 = vmatprep.mubr.f32.mxu0 0.0
    %v852 = vand.u32 %v71, 4294901760
    %v853 = vsub.f32 %v71, %v852
    %v854 = vand.u32 %v853, 4294901760
    %v855 = vsub.f32 %v853, %v854
    %v856 = vand.u32 %v855, 4294901760
    %857 = vmatmul.mubr.f32.gmra.mrb[0].mxu0 %v856
    %v858 = vpop.f32.mrb[0].mxu0
    %v859 = vadd.f32 0.0, %v858
    %v860 = vpop.f32.mrb[0].mxu0
    %861 = vdwg.mxu0
    %862 = vmatprep.subr.mxu0 0.0
    %v863 = vand.u32 %v44, 4294901760
    %v864 = vsub.f32 %v44, %v863
    %v865 = vand.u32 %v864, 4294901760
    %v866 = vsub.f32 %v864, %v865
    %v867 = vand.u32 %v866, 4294901760
    %868 = vmatpush1.msra.mxu0 %v867
    %869 = vmatprep.subr.mxu0 0.0
    %v870 = vand.u32 %v47, 4294901760
    %v871 = vsub.f32 %v47, %v870
    %v872 = vand.u32 %v871, 4294901760
    %v873 = vsub.f32 %v871, %v872
    %v874 = vand.u32 %v873, 4294901760
    %875 = vmatpush1.msra.mxu0 %v874
    %876 = vmatprep.subr.mxu0 0.0
    %v877 = vand.u32 %v50, 4294901760
    %v878 = vsub.f32 %v50, %v877
    %v879 = vand.u32 %v878, 4294901760
    %v880 = vsub.f32 %v878, %v879
    %v881 = vand.u32 %v880, 4294901760
    %882 = vmatpush1.msra.mxu0 %v881
    %883 = vmatprep.subr.mxu0 0.0
    %v884 = vand.u32 %v53, 4294901760
    %v885 = vsub.f32 %v53, %v884
    %v886 = vand.u32 %v885, 4294901760
    %v887 = vsub.f32 %v885, %v886
    %v888 = vand.u32 %v887, 4294901760
    %889 = vmatpush1.msra.mxu0 %v888
    %890 = vmatprep.subr.mxu0 0.0
    %v891 = vand.u32 %v56, 4294901760
    %v892 = vsub.f32 %v56, %v891
    %v893 = vand.u32 %v892, 4294901760
    %v894 = vsub.f32 %v892, %v893
    %v895 = vand.u32 %v894, 4294901760
    %896 = vmatpush1.msra.mxu0 %v895
    %897 = vmatprep.subr.mxu0 0.0
    %v898 = vand.u32 %v59, 4294901760
    %v899 = vsub.f32 %v59, %v898
    %v900 = vand.u32 %v899, 4294901760
    %v901 = vsub.f32 %v899, %v900
    %v902 = vand.u32 %v901, 4294901760
    %903 = vmatpush1.msra.mxu0 %v902
    %904 = vmatprep.subr.mxu0 0.0
    %v905 = vand.u32 %v62, 4294901760
    %v906 = vsub.f32 %v62, %v905
    %v907 = vand.u32 %v906, 4294901760
    %v908 = vsub.f32 %v906, %v907
    %v909 = vand.u32 %v908, 4294901760
    %910 = vmatpush1.msra.mxu0 %v909
    %911 = vmatprep.subr.mxu0 0.0
    %v912 = vand.u32 %v65, 4294901760
    %v913 = vsub.f32 %v65, %v912
    %v914 = vand.u32 %v913, 4294901760
    %v915 = vsub.f32 %v913, %v914
    %v916 = vand.u32 %v915, 4294901760
    %917 = vmatpush1.msra.mxu0 %v916
    %918 = vmatprep.subr.mxu0 0.0
    %919 = vmatpush1.msra.mxu0 0.0
    %920 = vmatprep.subr.mxu0 0.0
    %921 = vmatpush1.msra.mxu0 0.0
    %922 = vmatprep.subr.mxu0 0.0
    %923 = vmatpush1.msra.mxu0 0.0
    %924 = vmatprep.subr.mxu0 0.0
    %925 = vmatpush1.msra.mxu0 0.0
    %926 = vmatprep.subr.mxu0 0.0
    %927 = vmatpush1.msra.mxu0 0.0
    %928 = vmatprep.subr.mxu0 0.0
    %929 = vmatpush1.msra.mxu0 0.0
    %930 = vmatprep.subr.mxu0 0.0
    %931 = vmatpush1.msra.mxu0 0.0
    %932 = vmatprep.subr.mxu0 0.0
    %933 = vmatpush1.msra.mxu0 0.0
    %934 = vmatprep.subr.mxu0 0.0
    %935 = vmatpush1.msra.mxu0 0.0
    %936 = vmatprep.subr.mxu0 0.0
    %937 = vmatpush1.msra.mxu0 0.0
    %938 = vmatprep.subr.mxu0 0.0
    %939 = vmatpush1.msra.mxu0 0.0
    %940 = vmatprep.subr.mxu0 0.0
    %941 = vmatpush1.msra.mxu0 0.0
    %942 = vmatprep.subr.mxu0 0.0
    %943 = vmatpush1.msra.mxu0 0.0
    %944 = vmatprep.subr.mxu0 0.0
    %945 = vmatpush1.msra.mxu0 0.0
    %946 = vmatprep.subr.mxu0 0.0
    %947 = vmatpush1.msra.mxu0 0.0
    %948 = vmatprep.subr.mxu0 0.0
    %949 = vmatpush1.msra.mxu0 0.0
    %950 = vmatprep.subr.mxu0 0.0
    %951 = vmatpush1.msra.mxu0 0.0
    %952 = vmatprep.subr.mxu0 0.0
    %953 = vmatpush1.msra.mxu0 0.0
    %954 = vmatprep.subr.mxu0 0.0
    %955 = vmatpush1.msra.mxu0 0.0
    %956 = vmatprep.subr.mxu0 0.0
    %957 = vmatpush1.msra.mxu0 0.0
    %958 = vmatprep.subr.mxu0 0.0
    %959 = vmatpush1.msra.mxu0 0.0
    %960 = vmatprep.subr.mxu0 0.0
    %961 = vmatpush1.msra.mxu0 0.0
    %962 = vmatprep.subr.mxu0 0.0
    %963 = vmatpush1.msra.mxu0 0.0
    %964 = vmatprep.subr.mxu0 0.0
    %965 = vmatpush1.msra.mxu0 0.0
    %966 = vmatprep.mubr.f32.mxu0 0.0
    %v967 = vand.u32 %v68, 4294901760
    %968 = vmatmul.mubr.f32.gmra.mrb[0].mxu0 %v967
    %v969 = vpop.f32.mrb[0].mxu0
    %v970 = vadd.f32 %v849, %v969
    %v971 = vpop.f32.mrb[0].mxu0
    %972 = vmatprep.mubr.f32.mxu0 0.0
    %v973 = vand.u32 %v71, 4294901760
    %974 = vmatmul.mubr.f32.gmra.mrb[0].mxu0 %v973
    %v975 = vpop.f32.mrb[0].mxu0
    %v976 = vadd.f32 %v859, %v975
    %v977 = vpop.f32.mrb[0].mxu0
    %978 = vdwg.mxu0
    %979 = vmatprep.subr.mxu0 0.0
    %v980 = vand.u32 %v44, 4294901760
    %v981 = vsub.f32 %v44, %v980
    %982 = vmatpush1.msra.mxu0 %v981
    %983 = vmatprep.subr.mxu0 0.0
    %v984 = vand.u32 %v47, 4294901760
    %v985 = vsub.f32 %v47, %v984
    %986 = vmatpush1.msra.mxu0 %v985
    %987 = vmatprep.subr.mxu0 0.0
    %v988 = vand.u32 %v50, 4294901760
    %v989 = vsub.f32 %v50, %v988
    %990 = vmatpush1.msra.mxu0 %v989
    %991 = vmatprep.subr.mxu0 0.0
    %v992 = vand.u32 %v53, 4294901760
    %v993 = vsub.f32 %v53, %v992
    %994 = vmatpush1.msra.mxu0 %v993
    %995 = vmatprep.subr.mxu0 0.0
    %v996 = vand.u32 %v56, 4294901760
    %v997 = vsub.f32 %v56, %v996
    %998 = vmatpush1.msra.mxu0 %v997
    %999 = vmatprep.subr.mxu0 0.0
    %v1000 = vand.u32 %v59, 4294901760
    %v1001 = vsub.f32 %v59, %v1000
    %1002 = vmatpush1.msra.mxu0 %v1001
    %1003 = vmatprep.subr.mxu0 0.0
    %v1004 = vand.u32 %v62, 4294901760
    %v1005 = vsub.f32 %v62, %v1004
    %1006 = vmatpush1.msra.mxu0 %v1005
    %1007 = vmatprep.subr.mxu0 0.0
    %v1008 = vand.u32 %v65, 4294901760
    %v1009 = vsub.f32 %v65, %v1008
    %1010 = vmatpush1.msra.mxu0 %v1009
    %1011 = vmatprep.subr.mxu0 0.0
    %1012 = vmatpush1.msra.mxu0 0.0
    %1013 = vmatprep.subr.mxu0 0.0
    %1014 = vmatpush1.msra.mxu0 0.0
    %1015 = vmatprep.subr.mxu0 0.0
    %1016 = vmatpush1.msra.mxu0 0.0
    %1017 = vmatprep.subr.mxu0 0.0
    %1018 = vmatpush1.msra.mxu0 0.0
    %1019 = vmatprep.subr.mxu0 0.0
    %1020 = vmatpush1.msra.mxu0 0.0
    %1021 = vmatprep.subr.mxu0 0.0
    %1022 = vmatpush1.msra.mxu0 0.0
    %1023 = vmatprep.subr.mxu0 0.0
    %1024 = vmatpush1.msra.mxu0 0.0
    %1025 = vmatprep.subr.mxu0 0.0
    %1026 = vmatpush1.msra.mxu0 0.0
    %1027 = vmatprep.subr.mxu0 0.0
    %1028 = vmatpush1.msra.mxu0 0.0
    %1029 = vmatprep.subr.mxu0 0.0
    %1030 = vmatpush1.msra.mxu0 0.0
    %1031 = vmatprep.subr.mxu0 0.0
    %1032 = vmatpush1.msra.mxu0 0.0
    %1033 = vmatprep.subr.mxu0 0.0
    %1034 = vmatpush1.msra.mxu0 0.0
    %1035 = vmatprep.subr.mxu0 0.0
    %1036 = vmatpush1.msra.mxu0 0.0
    %1037 = vmatprep.subr.mxu0 0.0
    %1038 = vmatpush1.msra.mxu0 0.0
    %1039 = vmatprep.subr.mxu0 0.0
    %1040 = vmatpush1.msra.mxu0 0.0
    %1041 = vmatprep.subr.mxu0 0.0
    %1042 = vmatpush1.msra.mxu0 0.0
    %1043 = vmatprep.subr.mxu0 0.0
    %1044 = vmatpush1.msra.mxu0 0.0
    %1045 = vmatprep.subr.mxu0 0.0
    %1046 = vmatpush1.msra.mxu0 0.0
    %1047 = vmatprep.subr.mxu0 0.0
    %1048 = vmatpush1.msra.mxu0 0.0
    %1049 = vmatprep.subr.mxu0 0.0
    %1050 = vmatpush1.msra.mxu0 0.0
    %1051 = vmatprep.subr.mxu0 0.0
    %1052 = vmatpush1.msra.mxu0 0.0
    %1053 = vmatprep.subr.mxu0 0.0
    %1054 = vmatpush1.msra.mxu0 0.0
    %1055 = vmatprep.subr.mxu0 0.0
    %1056 = vmatpush1.msra.mxu0 0.0
    %1057 = vmatprep.subr.mxu0 0.0
    %1058 = vmatpush1.msra.mxu0 0.0
    %1059 = vmatprep.mubr.f32.mxu0 0.0
    %v1060 = vand.u32 %v68, 4294901760
    %v1061 = vsub.f32 %v68, %v1060
    %1062 = vmatmul.mubr.f32.gmra.mrb[0].mxu0 %v1061
    %v1063 = vpop.f32.mrb[0].mxu0
    %v1064 = vadd.f32 %v970, %v1063
    %v1065 = vpop.f32.mrb[0].mxu0
    %1066 = vmatprep.mubr.f32.mxu0 0.0
    %v1067 = vand.u32 %v71, 4294901760
    %v1068 = vsub.f32 %v71, %v1067
    %1069 = vmatmul.mubr.f32.gmra.mrb[0].mxu0 %v1068
    %v1070 = vpop.f32.mrb[0].mxu0
    %v1071 = vadd.f32 %v976, %v1070
    %v1072 = vpop.f32.mrb[0].mxu0
    %1073 = vdwg.mxu0
    %1074 = vmatprep.subr.mxu0 0.0
    %v1075 = vand.u32 %v44, 4294901760
    %1076 = vmatpush1.msra.mxu0 %v1075
    %1077 = vmatprep.subr.mxu0 0.0
    %v1078 = vand.u32 %v47, 4294901760
    %1079 = vmatpush1.msra.mxu0 %v1078
    %1080 = vmatprep.subr.mxu0 0.0
    %v1081 = vand.u32 %v50, 4294901760
    %1082 = vmatpush1.msra.mxu0 %v1081
    %1083 = vmatprep.subr.mxu0 0.0
    %v1084 = vand.u32 %v53, 4294901760
    %1085 = vmatpush1.msra.mxu0 %v1084
    %1086 = vmatprep.subr.mxu0 0.0
    %v1087 = vand.u32 %v56, 4294901760
    %1088 = vmatpush1.msra.mxu0 %v1087
    %1089 = vmatprep.subr.mxu0 0.0
    %v1090 = vand.u32 %v59, 4294901760
    %1091 = vmatpush1.msra.mxu0 %v1090
    %1092 = vmatprep.subr.mxu0 0.0
    %v1093 = vand.u32 %v62, 4294901760
    %1094 = vmatpush1.msra.mxu0 %v1093
    %1095 = vmatprep.subr.mxu0 0.0
    %v1096 = vand.u32 %v65, 4294901760
    %1097 = vmatpush1.msra.mxu0 %v1096
    %1098 = vmatprep.subr.mxu0 0.0
    %1099 = vmatpush1.msra.mxu0 0.0
    %1100 = vmatprep.subr.mxu0 0.0
    %1101 = vmatpush1.msra.mxu0 0.0
    %1102 = vmatprep.subr.mxu0 0.0
    %1103 = vmatpush1.msra.mxu0 0.0
    %1104 = vmatprep.subr.mxu0 0.0
    %1105 = vmatpush1.msra.mxu0 0.0
    %1106 = vmatprep.subr.mxu0 0.0
    %1107 = vmatpush1.msra.mxu0 0.0
    %1108 = vmatprep.subr.mxu0 0.0
    %1109 = vmatpush1.msra.mxu0 0.0
    %1110 = vmatprep.subr.mxu0 0.0
    %1111 = vmatpush1.msra.mxu0 0.0
    %1112 = vmatprep.subr.mxu0 0.0
    %1113 = vmatpush1.msra.mxu0 0.0
    %1114 = vmatprep.subr.mxu0 0.0
    %1115 = vmatpush1.msra.mxu0 0.0
    %1116 = vmatprep.subr.mxu0 0.0
    %1117 = vmatpush1.msra.mxu0 0.0
    %1118 = vmatprep.subr.mxu0 0.0
    %1119 = vmatpush1.msra.mxu0 0.0
    %1120 = vmatprep.subr.mxu0 0.0
    %1121 = vmatpush1.msra.mxu0 0.0
    %1122 = vmatprep.subr.mxu0 0.0
    %1123 = vmatpush1.msra.mxu0 0.0
    %1124 = vmatprep.subr.mxu0 0.0
    %1125 = vmatpush1.msra.mxu0 0.0
    %1126 = vmatprep.subr.mxu0 0.0
    %1127 = vmatpush1.msra.mxu0 0.0
    %1128 = vmatprep.subr.mxu0 0.0
    %1129 = vmatpush1.msra.mxu0 0.0
    %1130 = vmatprep.subr.mxu0 0.0
    %1131 = vmatpush1.msra.mxu0 0.0
    %1132 = vmatprep.subr.mxu0 0.0
    %1133 = vmatpush1.msra.mxu0 0.0
    %1134 = vmatprep.subr.mxu0 0.0
    %1135 = vmatpush1.msra.mxu0 0.0
    %1136 = vmatprep.subr.mxu0 0.0
    %1137 = vmatpush1.msra.mxu0 0.0
    %1138 = vmatprep.subr.mxu0 0.0
    %1139 = vmatpush1.msra.mxu0 0.0
    %1140 = vmatprep.subr.mxu0 0.0
    %1141 = vmatpush1.msra.mxu0 0.0
    %1142 = vmatprep.subr.mxu0 0.0
    %1143 = vmatpush1.msra.mxu0 0.0
    %1144 = vmatprep.subr.mxu0 0.0
    %1145 = vmatpush1.msra.mxu0 0.0
    %1146 = vmatprep.mubr.f32.mxu0 0.0
    %v1147 = vand.u32 %v68, 4294901760
    %v1148 = vsub.f32 %v68, %v1147
    %v1149 = vand.u32 %v1148, 4294901760
    %1150 = vmatmul.mubr.f32.gmra.mrb[0].mxu0 %v1149
    %v1151 = vpop.f32.mrb[0].mxu0
    %v1152 = vadd.f32 %v1064, %v1151
    %v1153 = vpop.f32.mrb[0].mxu0
    %1154 = vmatprep.mubr.f32.mxu0 0.0
    %v1155 = vand.u32 %v71, 4294901760
    %v1156 = vsub.f32 %v71, %v1155
    %v1157 = vand.u32 %v1156, 4294901760
    %1158 = vmatmul.mubr.f32.gmra.mrb[0].mxu0 %v1157
    %v1159 = vpop.f32.mrb[0].mxu0
    %v1160 = vadd.f32 %v1071, %v1159
    %v1161 = vpop.f32.mrb[0].mxu0
    %1162 = vdwg.mxu0
    %1163 = vmatprep.subr.mxu0 0.0
    %v1164 = vand.u32 %v44, 4294901760
    %v1165 = vsub.f32 %v44, %v1164
    %v1166 = vand.u32 %v1165, 4294901760
    %1167 = vmatpush1.msra.mxu0 %v1166
    %1168 = vmatprep.subr.mxu0 0.0
    %v1169 = vand.u32 %v47, 4294901760
    %v1170 = vsub.f32 %v47, %v1169
    %v1171 = vand.u32 %v1170, 4294901760
    %1172 = vmatpush1.msra.mxu0 %v1171
    %1173 = vmatprep.subr.mxu0 0.0
    %v1174 = vand.u32 %v50, 4294901760
    %v1175 = vsub.f32 %v50, %v1174
    %v1176 = vand.u32 %v1175, 4294901760
    %1177 = vmatpush1.msra.mxu0 %v1176
    %1178 = vmatprep.subr.mxu0 0.0
    %v1179 = vand.u32 %v53, 4294901760
    %v1180 = vsub.f32 %v53, %v1179
    %v1181 = vand.u32 %v1180, 4294901760
    %1182 = vmatpush1.msra.mxu0 %v1181
    %1183 = vmatprep.subr.mxu0 0.0
    %v1184 = vand.u32 %v56, 4294901760
    %v1185 = vsub.f32 %v56, %v1184
    %v1186 = vand.u32 %v1185, 4294901760
    %1187 = vmatpush1.msra.mxu0 %v1186
    %1188 = vmatprep.subr.mxu0 0.0
    %v1189 = vand.u32 %v59, 4294901760
    %v1190 = vsub.f32 %v59, %v1189
    %v1191 = vand.u32 %v1190, 4294901760
    %1192 = vmatpush1.msra.mxu0 %v1191
    %1193 = vmatprep.subr.mxu0 0.0
    %v1194 = vand.u32 %v62, 4294901760
    %v1195 = vsub.f32 %v62, %v1194
    %v1196 = vand.u32 %v1195, 4294901760
    %1197 = vmatpush1.msra.mxu0 %v1196
    %1198 = vmatprep.subr.mxu0 0.0
    %v1199 = vand.u32 %v65, 4294901760
    %v1200 = vsub.f32 %v65, %v1199
    %v1201 = vand.u32 %v1200, 4294901760
    %1202 = vmatpush1.msra.mxu0 %v1201
    %1203 = vmatprep.subr.mxu0 0.0
    %1204 = vmatpush1.msra.mxu0 0.0
    %1205 = vmatprep.subr.mxu0 0.0
    %1206 = vmatpush1.msra.mxu0 0.0
    %1207 = vmatprep.subr.mxu0 0.0
    %1208 = vmatpush1.msra.mxu0 0.0
    %1209 = vmatprep.subr.mxu0 0.0
    %1210 = vmatpush1.msra.mxu0 0.0
    %1211 = vmatprep.subr.mxu0 0.0
    %1212 = vmatpush1.msra.mxu0 0.0
    %1213 = vmatprep.subr.mxu0 0.0
    %1214 = vmatpush1.msra.mxu0 0.0
    %1215 = vmatprep.subr.mxu0 0.0
    %1216 = vmatpush1.msra.mxu0 0.0
    %1217 = vmatprep.subr.mxu0 0.0
    %1218 = vmatpush1.msra.mxu0 0.0
    %1219 = vmatprep.subr.mxu0 0.0
    %1220 = vmatpush1.msra.mxu0 0.0
    %1221 = vmatprep.subr.mxu0 0.0
    %1222 = vmatpush1.msra.mxu0 0.0
    %1223 = vmatprep.subr.mxu0 0.0
    %1224 = vmatpush1.msra.mxu0 0.0
    %1225 = vmatprep.subr.mxu0 0.0
    %1226 = vmatpush1.msra.mxu0 0.0
    %1227 = vmatprep.subr.mxu0 0.0
    %1228 = vmatpush1.msra.mxu0 0.0
    %1229 = vmatprep.subr.mxu0 0.0
    %1230 = vmatpush1.msra.mxu0 0.0
    %1231 = vmatprep.subr.mxu0 0.0
    %1232 = vmatpush1.msra.mxu0 0.0
    %1233 = vmatprep.subr.mxu0 0.0
    %1234 = vmatpush1.msra.mxu0 0.0
    %1235 = vmatprep.subr.mxu0 0.0
    %1236 = vmatpush1.msra.mxu0 0.0
    %1237 = vmatprep.subr.mxu0 0.0
    %1238 = vmatpush1.msra.mxu0 0.0
    %1239 = vmatprep.subr.mxu0 0.0
    %1240 = vmatpush1.msra.mxu0 0.0
    %1241 = vmatprep.subr.mxu0 0.0
    %1242 = vmatpush1.msra.mxu0 0.0
    %1243 = vmatprep.subr.mxu0 0.0
    %1244 = vmatpush1.msra.mxu0 0.0
    %1245 = vmatprep.subr.mxu0 0.0
    %1246 = vmatpush1.msra.mxu0 0.0
    %1247 = vmatprep.subr.mxu0 0.0
    %1248 = vmatpush1.msra.mxu0 0.0
    %1249 = vmatprep.subr.mxu0 0.0
    %1250 = vmatpush1.msra.mxu0 0.0
    %1251 = vmatprep.mubr.f32.mxu0 0.0
    %v1252 = vand.u32 %v68, 4294901760
    %1253 = vmatmul.mubr.f32.gmra.mrb[0].mxu0 %v1252
    %v1254 = vpop.f32.mrb[0].mxu0
    %v1255 = vadd.f32 %v1152, %v1254
    %v1256 = vpop.f32.mrb[0].mxu0
    %1257 = vmatprep.mubr.f32.mxu0 0.0
    %v1258 = vand.u32 %v71, 4294901760
    %1259 = vmatmul.mubr.f32.gmra.mrb[0].mxu0 %v1258
    %v1260 = vpop.f32.mrb[0].mxu0
    %v1261 = vadd.f32 %v1160, %v1260
    %v1262 = vpop.f32.mrb[0].mxu0
    %1263 = vdwg.mxu0
    %1264 = vmatprep.subr.mxu0 0.0
    %v1265 = vand.u32 %v44, 4294901760
    %1266 = vmatpush1.msra.mxu0 %v1265
    %1267 = vmatprep.subr.mxu0 0.0
    %v1268 = vand.u32 %v47, 4294901760
    %1269 = vmatpush1.msra.mxu0 %v1268
    %1270 = vmatprep.subr.mxu0 0.0
    %v1271 = vand.u32 %v50, 4294901760
    %1272 = vmatpush1.msra.mxu0 %v1271
    %1273 = vmatprep.subr.mxu0 0.0
    %v1274 = vand.u32 %v53, 4294901760
    %1275 = vmatpush1.msra.mxu0 %v1274
    %1276 = vmatprep.subr.mxu0 0.0
    %v1277 = vand.u32 %v56, 4294901760
    %1278 = vmatpush1.msra.mxu0 %v1277
    %1279 = vmatprep.subr.mxu0 0.0
    %v1280 = vand.u32 %v59, 4294901760
    %1281 = vmatpush1.msra.mxu0 %v1280
    %1282 = vmatprep.subr.mxu0 0.0
    %v1283 = vand.u32 %v62, 4294901760
    %1284 = vmatpush1.msra.mxu0 %v1283
    %1285 = vmatprep.subr.mxu0 0.0
    %v1286 = vand.u32 %v65, 4294901760
    %1287 = vmatpush1.msra.mxu0 %v1286
    %1288 = vmatprep.subr.mxu0 0.0
    %1289 = vmatpush1.msra.mxu0 0.0
    %1290 = vmatprep.subr.mxu0 0.0
    %1291 = vmatpush1.msra.mxu0 0.0
    %1292 = vmatprep.subr.mxu0 0.0
    %1293 = vmatpush1.msra.mxu0 0.0
    %1294 = vmatprep.subr.mxu0 0.0
    %1295 = vmatpush1.msra.mxu0 0.0
    %1296 = vmatprep.subr.mxu0 0.0
    %1297 = vmatpush1.msra.mxu0 0.0
    %1298 = vmatprep.subr.mxu0 0.0
    %1299 = vmatpush1.msra.mxu0 0.0
    %1300 = vmatprep.subr.mxu0 0.0
    %1301 = vmatpush1.msra.mxu0 0.0
    %1302 = vmatprep.subr.mxu0 0.0
    %1303 = vmatpush1.msra.mxu0 0.0
    %1304 = vmatprep.subr.mxu0 0.0
    %1305 = vmatpush1.msra.mxu0 0.0
    %1306 = vmatprep.subr.mxu0 0.0
    %1307 = vmatpush1.msra.mxu0 0.0
    %1308 = vmatprep.subr.mxu0 0.0
    %1309 = vmatpush1.msra.mxu0 0.0
    %1310 = vmatprep.subr.mxu0 0.0
    %1311 = vmatpush1.msra.mxu0 0.0
    %1312 = vmatprep.subr.mxu0 0.0
    %1313 = vmatpush1.msra.mxu0 0.0
    %1314 = vmatprep.subr.mxu0 0.0
    %1315 = vmatpush1.msra.mxu0 0.0
    %1316 = vmatprep.subr.mxu0 0.0
    %1317 = vmatpush1.msra.mxu0 0.0
    %1318 = vmatprep.subr.mxu0 0.0
    %1319 = vmatpush1.msra.mxu0 0.0
    %1320 = vmatprep.subr.mxu0 0.0
    %1321 = vmatpush1.msra.mxu0 0.0
    %1322 = vmatprep.subr.mxu0 0.0
    %1323 = vmatpush1.msra.mxu0 0.0
    %1324 = vmatprep.subr.mxu0 0.0
    %1325 = vmatpush1.msra.mxu0 0.0
    %1326 = vmatprep.subr.mxu0 0.0
    %1327 = vmatpush1.msra.mxu0 0.0
    %1328 = vmatprep.subr.mxu0 0.0
    %1329 = vmatpush1.msra.mxu0 0.0
    %1330 = vmatprep.subr.mxu0 0.0
    %1331 = vmatpush1.msra.mxu0 0.0
    %1332 = vmatprep.subr.mxu0 0.0
    %1333 = vmatpush1.msra.mxu0 0.0
    %1334 = vmatprep.subr.mxu0 0.0
    %1335 = vmatpush1.msra.mxu0 0.0
    %1336 = vmatprep.mubr.f32.mxu0 0.0
    %v1337 = vand.u32 %v68, 4294901760
    %1338 = vmatmul.mubr.f32.gmra.mrb[0].mxu0 %v1337
    %v1339 = vpop.f32.mrb[0].mxu0
    %v1340 = vadd.f32 %v1255, %v1339
    %v1341 = vpop.f32.mrb[0].mxu0
    %1342 = vmatprep.mubr.f32.mxu0 0.0
    %v1343 = vand.u32 %v71, 4294901760
    %1344 = vmatmul.mubr.f32.gmra.mrb[0].mxu0 %v1343
    %v1345 = vpop.f32.mrb[0].mxu0
    %v1346 = vadd.f32 %v1261, %v1345
    %v1347 = vpop.f32.mrb[0].mxu0
    %1348 = vdwg.mxu0
    %1349 = vst [vmem:[#allocation5] sm:$0xff] %v758
    %1350 = vst [vmem:[#allocation5 + $0x8] sm:$0xff] %v760
    %vm1351 = vcmask 359424
    %1352 = vst.msk [vmem:[#allocation5 + $0x10] sm:$0xff] %vm1351, %v1340
    %1353 = vst [vmem:[#allocation5 + $0x18] sm:$0xff] %v765
    %1354 = vst [vmem:[#allocation5 + $0x20] sm:$0xff] %v767
    %1355 = vst.msk [vmem:[#allocation5 + $0x28] sm:$0xff] %vm1351, %v1346
    // Predicated region
    $region14: #{tpu_custom_call.1} parent=1 // pred_check
      _
    $region15: #{tpu_custom_call.1} parent=1 // pred_check_branch
      %1357 = sbr.rel (0) target = $region17
    $region16: #{tpu_custom_call.1} parent=1 // pred_region
      %s1359 = ssub.s32 768, 768
      %1360 = vsyncadd [#allocation4], %s1359
      %s1361 = sshll.u32 [#allocation5], 4
      %s1362 = int_to_ptr.vmem [resolvable:$true] %s1361
      %1367 = dma.vmem_to_hbm [thread:$0]  %s1362, 768, %s2, [#allocation4], 384, 384, 24
    $region17: #{tpu_custom_call.1} parent=1 // pred_fallthru
      _
    // Predicated region
    $region18: #{tpu_custom_call.1} parent=1 // pred_check
      _
    $region19: #{tpu_custom_call.1} parent=1 // pred_check_branch
      %1369 = sbr.rel (0) target = $region21
    $region20: #{tpu_custom_call.1} parent=1 // pred_region
      %1370 = dma.done [#allocation4], 768
    $region21: #{tpu_custom_call.1} parent=1 // pred_fallthru
      _
    %1371 = vsyncpa [#allocation3], 1
    %1372 = vsyncpa [#allocation4], 1

</llo_original>
